<compile_context>
chip_gen: v7x
topology: tpu7x:2x2x1
jax: 0.10.0
libtpu: 0.0.40
codegen_flags: <defaults>
</compile_context>

<pallas_src>
import functools

import jax
import jax.numpy as jnp
from jax import lax
from jax.experimental import pallas as pl
from jax.experimental.pallas import tpu as pltpu

NUM_CLASSES = 26

_STATIC_WEIGHTS = (
    0.1435, 0.187, 0.1692, 0.1165, 0.1949, 0.1204, 0.1728, 0.1372, 0.162,
    0.154, 0.1987, 0.1057, 0.1482, 0.1192, 0.159, 0.1929, 0.1158, 0.1907,
    0.1345, 0.1307, 0.1665, 0.1698, 0.1797, 0.1657, 0.152, 0.1537,
)


def _cdiv(a, b):
    return -(-a // b)


def _round_up(a, b):
    return _cdiv(a, b) * b


def _default_num_splits():
    # A 2-way batch split only helps on parts with two TensorCores per chip (v7x);
    # on single-core chips (v5e / v6e) it is pure overhead.
    try:
        kind = jax.devices()[0].device_kind.lower()
    except Exception:
        return 1
    return 2 if "v7" in kind else 1


def _discrete_loss_kernel(pred_ref, target_ref, sq_out_ref, tsum_out_ref,
                          acc_sq, acc_t, *, steps, block_rows, n_rows, needs_mask):
    """Accumulate per-class sums of (pred - target)^2 and of target."""
    k = pl.program_id(1)

    @pl.when(k == 0)
    def _():
        acc_sq[...] = jnp.zeros_like(acc_sq)
        acc_t[...] = jnp.zeros_like(acc_t)

    p = pred_ref[...].astype(jnp.float32)
    t = target_ref[...].astype(jnp.float32)
    diff = p - t
    sq = diff * diff

    if needs_mask:
        s = pl.program_id(0)
        row0 = (s * steps + k) * block_rows
        rows = row0 + lax.broadcasted_iota(jnp.int32, sq.shape, 0)
        valid = rows < n_rows
        sq = jnp.where(valid, sq, 0.0)
        t = jnp.where(valid, t, 0.0)

    # Per-class partial sums: a tree of VPU adds + one cross-sublane reduce.
    acc_sq[...] += jnp.sum(sq, axis=0, keepdims=True)
    acc_t[...] += jnp.sum(t, axis=0, keepdims=True)

    @pl.when(k == pl.num_programs(1) - 1)
    def _():
        sq_out_ref[...] = jnp.broadcast_to(acc_sq[...], sq_out_ref.shape)
        tsum_out_ref[...] = jnp.broadcast_to(acc_t[...], tsum_out_ref.shape)


@functools.partial(jax.jit, static_argnames=("weight_type", "tile_rows", "num_splits"))
def discrete_loss(pred, target, weight_type="mean", tile_rows=4096, num_splits=None):
    """loss = sum((pred - target)**2 * weights); returns a scalar float32."""
    n, c = pred.shape
    assert c == NUM_CLASSES and target.shape == pred.shape

    if num_splits is None:
        num_splits = _default_num_splits()
    num_splits = max(1, int(num_splits))

    # Row alignment respecting sublane packing of the native dtypes
    # (f32/i32 -> 8, bf16 -> 16, int8/fp8 -> 32).
    itemsize = min(jnp.dtype(pred.dtype).itemsize, jnp.dtype(target.dtype).itemsize)
    row_align = 8 * max(1, 4 // max(1, itemsize))
    tile_rows = max(row_align, (int(tile_rows) // row_align) * row_align)

    max_aligned = (n // row_align) * row_align
    if max_aligned == 0 or n <= row_align * num_splits:
        # Tiny batch: one whole-array block (block dims == array dims is legal).
        num_splits, block_rows, steps, nblocks, needs_mask = 1, n, 1, 1, False
    else:
        rows_per_split = _cdiv(n, num_splits)
        block_rows = min(tile_rows, _round_up(rows_per_split, row_align), max_aligned)
        steps = _cdiv(rows_per_split, block_rows)
        nblocks = _cdiv(n, block_rows)
        needs_mask = (num_splits * steps * block_rows != n)

    if num_splits * steps == nblocks:
        def in_idx(s, k):
            return (s * steps + k, 0)
    else:
        # The grid over-covers the rows; clamp to the last valid block (the extra
        # iteration's contribution is fully masked out inside the kernel).
        def in_idx(s, k):
            return (jnp.minimum(s * steps + k, nblocks - 1), 0)

    kernel = functools.partial(
        _discrete_loss_kernel,
        steps=steps, block_rows=block_rows, n_rows=n, needs_mask=needs_mask)

    out_sq, out_t = pl.pallas_call(
        kernel,
        out_shape=(
            jax.ShapeDtypeStruct((num_splits * 8, NUM_CLASSES), jnp.float32),
            jax.ShapeDtypeStruct((num_splits * 8, NUM_CLASSES), jnp.float32),
        ),
        grid_spec=pltpu.PrefetchScalarGridSpec(
            num_scalar_prefetch=0,
            grid=(num_splits, steps),
            in_specs=[
                pl.BlockSpec((block_rows, NUM_CLASSES), in_idx),
                pl.BlockSpec((block_rows, NUM_CLASSES), in_idx),
            ],
            out_specs=[
                pl.BlockSpec((8, NUM_CLASSES), lambda s, k: (s, 0)),
                pl.BlockSpec((8, NUM_CLASSES), lambda s, k: (s, 0)),
            ],
            scratch_shapes=[
                pltpu.VMEM((1, NUM_CLASSES), jnp.float32),
                pltpu.VMEM((1, NUM_CLASSES), jnp.float32),
            ],
        ),
        compiler_params=pltpu.CompilerParams(
            dimension_semantics=("parallel", "arbitrary"),
        ),
        cost_estimate=pl.CostEstimate(
            flops=5 * n * NUM_CLASSES,
            transcendentals=0,
            bytes_accessed=n * NUM_CLASSES * (
                jnp.dtype(pred.dtype).itemsize + jnp.dtype(target.dtype).itemsize),
        ),
    )(pred, target)

    # Every sublane row of a split's output block holds the same partial sum.
    per_class_sq = out_sq.reshape(num_splits, 8, NUM_CLASSES)[:, 0, :].sum(axis=0)

    if weight_type == "mean":
        weights = jnp.full((NUM_CLASSES,), 1.0 / NUM_CLASSES, jnp.float32)
    elif weight_type == "static":
        weights = jnp.asarray(_STATIC_WEIGHTS, jnp.float32)
    elif weight_type == "dynamic":
        target_stats = out_t.reshape(num_splits, 8, NUM_CLASSES)[:, 0, :].sum(axis=0)
        weights = jnp.where(target_stats != 0,
                            1.0 / jnp.log(target_stats + 1.2),
                            jnp.float32(1e-4))
    else:
        raise ValueError(f"unknown weight_type: {weight_type}")

    return jnp.sum(per_class_sq * weights)


def _reference_loss(pred, target, weight_type):
    pred = pred.astype(jnp.float32)
    target = target.astype(jnp.float32)
    if weight_type == "mean":
        w = jnp.ones((1, NUM_CLASSES), jnp.float32) / NUM_CLASSES
    elif weight_type == "static":
        w = jnp.asarray(_STATIC_WEIGHTS, jnp.float32)[None, :]
    else:
        ts = jnp.sum(target, axis=0, keepdims=True)
        w = jnp.where(ts != 0, 1.0 / jnp.log(ts + 1.2), jnp.float32(1e-4))
    return jnp.sum((pred - target) ** 2 * w)


if __name__ == "__main__":
    key = jax.random.PRNGKey(0)
    ok = True
    # n=16 hits the exact-block path, n=19 hits the masked ragged-tail path.
    for n in (16, 19):
        k1, k2 = jax.random.split(jax.random.fold_in(key, n))
        pred = jax.random.normal(k1, (n, NUM_CLASSES), dtype=jnp.float32)
        target = (jax.random.uniform(k2, (n, NUM_CLASSES)) > 0.5).astype(jnp.float32)
        for wt in ("mean", "static", "dynamic"):
            loss = discrete_loss(pred, target, weight_type=wt)
            jax.block_until_ready(loss)
            ref = _reference_loss(pred, target, wt)
            if not jnp.allclose(loss, ref, rtol=1e-5, atol=1e-4):
                ok = False
                print(f"mismatch: n={n} weight_type={wt} got={loss} ref={ref}")
    if ok:
        print("KERNEL_OK")
</pallas_src>

<mosaic_0001>
module attributes {stable_mosaic.version = 11 : i64} {
  func.func @_discrete_loss_kernel(%arg0: i32, %arg1: i32, %arg2: memref<16x26xf32, #tpu.memory_space<vmem>>, %arg3: memref<16x26xf32, #tpu.memory_space<vmem>>, %arg4: memref<8x26xf32, #tpu.memory_space<vmem>>, %arg5: memref<8x26xf32, #tpu.memory_space<vmem>>, %arg6: memref<1x26xf32, #tpu.memory_space<vmem>>, %arg7: memref<1x26xf32, #tpu.memory_space<vmem>>) attributes {dimension_semantics = [#tpu.dimension_semantics<parallel>, #tpu.dimension_semantics<arbitrary>], iteration_bounds = array<i64: 1, 1>, scalar_prefetch = 0 : i64, scratch_operands = 2 : i64, tpu.core_type = #tpu.core_type<tc>, window_params = [{transform_indices = @transform_0, window_bounds = array<i64: 16, 26>}, {transform_indices = @transform_1, window_bounds = array<i64: 16, 26>}, {transform_indices = @transform_2, window_bounds = array<i64: 8, 26>}, {transform_indices = @transform_3, window_bounds = array<i64: 8, 26>}]} {
    %c0_i32 = arith.constant 0 : i32
    %0 = arith.cmpi eq, %arg1, %c0_i32 : i32
    %1 = arith.extui %0 : i1 to i32
    %c0_i32_0 = arith.constant 0 : i32
    %2 = arith.cmpi ne, %1, %c0_i32_0 : i32
    scf.if %2 {
      %cst_15 = arith.constant 0.000000e+00 : f32
      %20 = vector.broadcast %cst_15 : f32 to vector<1x26xf32>
      %c0_16 = arith.constant 0 : index
      %c0_17 = arith.constant 0 : index
      %21 = vector.load %arg6[%c0_16, %c0_17] : memref<1x26xf32, #tpu.memory_space<vmem>>, vector<1x26xf32>
      tpu.vector_store %arg6[%c0_16, %c0_17], %20 {strides = array<i32>} : memref<1x26xf32, #tpu.memory_space<vmem>>, vector<1x26xf32>,
      %cst_18 = arith.constant 0.000000e+00 : f32
      %22 = vector.broadcast %cst_18 : f32 to vector<1x26xf32>
      %c0_19 = arith.constant 0 : index
      %c0_20 = arith.constant 0 : index
      %23 = vector.load %arg7[%c0_19, %c0_20] : memref<1x26xf32, #tpu.memory_space<vmem>>, vector<1x26xf32>
      tpu.vector_store %arg7[%c0_19, %c0_20], %22 {strides = array<i32>} : memref<1x26xf32, #tpu.memory_space<vmem>>, vector<1x26xf32>,
    } else {
    }
    %c0 = arith.constant 0 : index
    %c0_1 = arith.constant 0 : index
    %3 = vector.load %arg2[%c0, %c0_1] : memref<16x26xf32, #tpu.memory_space<vmem>>, vector<16x26xf32>
    %c0_2 = arith.constant 0 : index
    %c0_3 = arith.constant 0 : index
    %4 = vector.load %arg3[%c0_2, %c0_3] : memref<16x26xf32, #tpu.memory_space<vmem>>, vector<16x26xf32>
    %5 = arith.subf %3, %4 : vector<16x26xf32>
    %6 = arith.mulf %5, %5 : vector<16x26xf32>
    %c0_4 = arith.constant 0 : index
    %c0_5 = arith.constant 0 : index
    %7 = vector.load %arg6[%c0_4, %c0_5] : memref<1x26xf32, #tpu.memory_space<vmem>>, vector<1x26xf32>
    %cst = arith.constant dense<0.000000e+00> : vector<26xf32>
    %8 = vector.multi_reduction <add>, %6, %cst [0] : vector<16x26xf32> to vector<26xf32>
    %9 = vector.shape_cast %8 : vector<26xf32> to vector<1x26xf32>
    %10 = arith.addf %7, %9 : vector<1x26xf32>
    %c0_6 = arith.constant 0 : index
    %c0_7 = arith.constant 0 : index
    %11 = vector.load %arg6[%c0_6, %c0_7] : memref<1x26xf32, #tpu.memory_space<vmem>>, vector<1x26xf32>
    tpu.vector_store %arg6[%c0_6, %c0_7], %10 {strides = array<i32>} : memref<1x26xf32, #tpu.memory_space<vmem>>, vector<1x26xf32>,
    %c0_8 = arith.constant 0 : index
    %c0_9 = arith.constant 0 : index
    %12 = vector.load %arg7[%c0_8, %c0_9] : memref<1x26xf32, #tpu.memory_space<vmem>>, vector<1x26xf32>
    %cst_10 = arith.constant dense<0.000000e+00> : vector<26xf32>
    %13 = vector.multi_reduction <add>, %4, %cst_10 [0] : vector<16x26xf32> to vector<26xf32>
    %14 = vector.shape_cast %13 : vector<26xf32> to vector<1x26xf32>
    %15 = arith.addf %12, %14 : vector<1x26xf32>
    %c0_11 = arith.constant 0 : index
    %c0_12 = arith.constant 0 : index
    %16 = vector.load %arg7[%c0_11, %c0_12] : memref<1x26xf32, #tpu.memory_space<vmem>>, vector<1x26xf32>
    tpu.vector_store %arg7[%c0_11, %c0_12], %15 {strides = array<i32>} : memref<1x26xf32, #tpu.memory_space<vmem>>, vector<1x26xf32>,
    %c0_i32_13 = arith.constant 0 : i32
    %17 = arith.cmpi eq, %arg1, %c0_i32_13 : i32
    %18 = arith.extui %17 : i1 to i32
    %c0_i32_14 = arith.constant 0 : i32
    %19 = arith.cmpi ne, %18, %c0_i32_14 : i32
    scf.if %19 {
      %c0_15 = arith.constant 0 : index
      %c0_16 = arith.constant 0 : index
      %20 = vector.load %arg6[%c0_15, %c0_16] : memref<1x26xf32, #tpu.memory_space<vmem>>, vector<1x26xf32>
      %21 = vector.shape_cast %20 : vector<1x26xf32> to vector<1x26xf32>
      %22 = vector.broadcast %21 : vector<1x26xf32> to vector<8x26xf32>
      %c0_17 = arith.constant 0 : index
      %c0_18 = arith.constant 0 : index
      %23 = vector.load %arg4[%c0_17, %c0_18] : memref<8x26xf32, #tpu.memory_space<vmem>>, vector<8x26xf32>
      tpu.vector_store %arg4[%c0_17, %c0_18], %22 {strides = array<i32>} : memref<8x26xf32, #tpu.memory_space<vmem>>, vector<8x26xf32>,
      %c0_19 = arith.constant 0 : index
      %c0_20 = arith.constant 0 : index
      %24 = vector.load %arg7[%c0_19, %c0_20] : memref<1x26xf32, #tpu.memory_space<vmem>>, vector<1x26xf32>
      %25 = vector.shape_cast %24 : vector<1x26xf32> to vector<1x26xf32>
      %26 = vector.broadcast %25 : vector<1x26xf32> to vector<8x26xf32>
      %c0_21 = arith.constant 0 : index
      %c0_22 = arith.constant 0 : index
      %27 = vector.load %arg5[%c0_21, %c0_22] : memref<8x26xf32, #tpu.memory_space<vmem>>, vector<8x26xf32>
      tpu.vector_store %arg5[%c0_21, %c0_22], %26 {strides = array<i32>} : memref<8x26xf32, #tpu.memory_space<vmem>>, vector<8x26xf32>,
    } else {
    }
    return
  }
  func.func @transform_0(%arg0: i32, %arg1: i32) -> (i32, i32) {
    %c1_i32 = arith.constant 1 : i32
    %0 = arith.muli %arg0, %c1_i32 : i32
    %1 = arith.addi %0, %arg1 : i32
    %c0_i32 = arith.constant 0 : i32
    %c0_i32_0 = arith.constant 0 : i32
    return %1, %c0_i32 : i32, i32
  }
  func.func @transform_1(%arg0: i32, %arg1: i32) -> (i32, i32) {
    %c1_i32 = arith.constant 1 : i32
    %0 = arith.muli %arg0, %c1_i32 : i32
    %1 = arith.addi %0, %arg1 : i32
    %c0_i32 = arith.constant 0 : i32
    %c0_i32_0 = arith.constant 0 : i32
    return %1, %c0_i32 : i32, i32
  }
  func.func @transform_2(%arg0: i32, %arg1: i32) -> (i32, i32) {
    %c0_i32 = arith.constant 0 : i32
    %c0_i32_0 = arith.constant 0 : i32
    return %arg0, %c0_i32 : i32, i32
  }
  func.func @transform_3(%arg0: i32, %arg1: i32) -> (i32, i32) {
    %c0_i32 = arith.constant 0 : i32
    %c0_i32_0 = arith.constant 0 : i32
    return %arg0, %c0_i32 : i32, i32
  }
}

</mosaic_0001>

<llo_original>
// kernel: discrete_loss.1
$region0: #{discrete_loss.1}
  #allocation0 [shape = 'u32[]', space=smem, size = 0x4, offset = 0x4, fixed_abs, tag = 'smem constant byte address 0x4 - core index']
  #allocation1 [shape = 'u32[144,128]{1,0:T(1,128)}', space=vmem, size = 0x12000, scoped, tag = 'internal scratch']
  #allocation2 [shape = 'f32[1,26]{1,0:T(1,128)}', space=vmem, size = 0x200, scoped, tag = 'scratch operand']
  #allocation3 [shape = 'f32[1,26]{1,0:T(1,128)}', space=vmem, size = 0x200, scoped, tag = 'scratch operand']
  %s0 = inlined_call_operand.hbm [shape: f32[16,26], index: 0, kind: input, shape index: {}]
  %s1 = inlined_call_operand.hbm [shape: f32[16,26], index: 1, kind: input, shape index: {}]
  %s2 = inlined_call_operand.vmem [shape: f32[8,26], index: 2, kind: output, shape index: {0}]
  %s3 = inlined_call_operand.hbm [shape: f32[8,26], index: 3, kind: output, shape index: {1}]
  %4 = xla_tuple %s2, %s3
  %s5 = sld [smem:[#allocation0]]
  $region42: #{discrete_loss.1} parent=0
    _
  %s7 = ssub.s32 1, %s5
  %s8 = scalar_select 0, %s7, %s5
  $region1: #{discrete_loss.1} parent=0
    #allocation4 [shape = 'u8[8192]{0}', space=vmem, size = 0x2000, scoped, tag = 'input window, operand 0, single buffered']
    #allocation5 [shape = 's32[1]{0}', space=sflag, size = 0x4, scoped, tag = 'scoped memory for discrete_loss.1']
    #allocation6 [shape = 's32[1]{0}', space=sflag, size = 0x4, scoped, tag = 'scoped memory for discrete_loss.1']
    #allocation7 [shape = 'u8[8192]{0}', space=vmem, size = 0x2000, scoped, tag = 'input window, operand 1, single buffered']
    #allocation8 [shape = 's32[1]{0}', space=sflag, size = 0x4, scoped, tag = 'scoped memory for discrete_loss.1']
    #allocation9 [shape = 'u8[4096]{0}', space=vmem, size = 0x1000, scoped, tag = 'output window, operand 1, single buffered']
    %9 = vsyncpa [#allocation5], 0
    %10 = vsyncpa [#allocation8], 0
    %11 = vsyncpa [#allocation6], 0
    // Predicated region
    $region2: #{discrete_loss.1} parent=1 // pred_check
      _
    $region3: #{discrete_loss.1} parent=1 // pred_check_branch
      %13 = sbr.rel (0) target = $region5
    $region4: #{discrete_loss.1} parent=1 // pred_region
      %s14 = sadd.s32 0, 0
      %s15 = smul.u32 2, %s14
      %s17 = ssub.s32 256, 256
      %18 = vsyncadd [#allocation5], %s17
      %s19 = smul.addr %s15, 128
      %s20 = scalar_lea.hbm %s0, %s19
      %s21 = sshll.u32 [#allocation4], 4
      %s22 = int_to_ptr.vmem [resolvable:$true] %s21
      %27 = dma.hbm_to_vmem [thread:$0]  %s20, 256, %s22, [#allocation5], 128, 128, 8
    $region5: #{discrete_loss.1} parent=1 // pred_fallthru
      _
    // Predicated region
    $region6: #{discrete_loss.1} parent=1 // pred_check
      _
    $region7: #{discrete_loss.1} parent=1 // pred_check_branch
      %29 = sbr.rel (0) target = $region9
    $region8: #{discrete_loss.1} parent=1 // pred_region
      %s30 = sadd.s32 0, 0
      %s31 = smul.u32 2, %s30
      %s33 = ssub.s32 256, 256
      %34 = vsyncadd [#allocation8], %s33
      %s35 = smul.addr %s31, 128
      %s36 = scalar_lea.hbm %s1, %s35
      %s37 = sshll.u32 [#allocation7], 4
      %s38 = int_to_ptr.vmem [resolvable:$true] %s37
      %43 = dma.hbm_to_vmem [thread:$0]  %s36, 256, %s38, [#allocation8], 128, 128, 8
    $region9: #{discrete_loss.1} parent=1 // pred_fallthru
      _
    // Predicated region
    $region10: #{discrete_loss.1} parent=1 // pred_check
      _
    $region11: #{discrete_loss.1} parent=1 // pred_check_branch
      %45 = sbr.rel (0) target = $region13
    $region12: #{discrete_loss.1} parent=1 // pred_region
      %46 = dma.done [#allocation5], 256
    $region13: #{discrete_loss.1} parent=1 // pred_fallthru
      _
    // Predicated region
    $region14: #{discrete_loss.1} parent=1 // pred_check
      _
    $region15: #{discrete_loss.1} parent=1 // pred_check_branch
      %48 = sbr.rel (0) target = $region17
    $region16: #{discrete_loss.1} parent=1 // pred_region
      %49 = dma.done [#allocation8], 256
    $region17: #{discrete_loss.1} parent=1 // pred_fallthru
      _
    %s50 = sadd.s32 0, 0
    %s51 = smul.u32 2, %s50
    %s52 = sadd.s32 0, 0
    %s53 = smul.u32 2, %s52
    %p54 = scmp.eq.s32.totalorder 0, 0
    // Predicated region
    $region18: #{discrete_loss.1} parent=1 // pred_check
      %p55 = pneg %p54
    $region19: #{discrete_loss.1} parent=1 // pred_check_branch
      %57 = sbr.rel (%p55) target = $region21
    $region20: #{discrete_loss.1} parent=1 // pred_region
      %vm58 = vcmask 204800
      %59 = vst.msk [vmem:[#allocation2] sm:$0x1] %vm58, 0.0
      %60 = vst.msk [vmem:[#allocation3] sm:$0x1] %vm58, 0.0
    $region21: #{discrete_loss.1} parent=1 // pred_fallthru
      _
    %v61 = vld [vmem:[#allocation4] sm:$0xff]
    %v62 = vld [vmem:[#allocation4 + $0x8] sm:$0xff]
    %v63 = vld [vmem:[#allocation7] sm:$0xff]
    %v64 = vld [vmem:[#allocation7 + $0x8] sm:$0xff]
    %v65 = vsub.f32 %v61, %v63
    %v66 = vsub.f32 %v62, %v64
    %v67 = vmul.f32 %v65, %v65
    %v68 = vmul.f32 %v66, %v66
    %v69 = vld [vmem:[#allocation2] sm:$0x1]
    %vm70 = vcmask 211968
    %v71 = vsel %vm70, %v67, 0.0
    %v72 = vsel %vm70, %v68, 0.0
    %v73 = vadd.f32 %v71, %v72
    %v74 = vrot.slane %v73, 4
    %v75 = vadd.f32 %v73, %v74
    %v76 = vrot.slane %v75, 2
    %v77 = vadd.f32 %v75, %v76
    %v78 = vrot.slane %v77, 1
    %v79 = vadd.f32 %v77, %v78
    %v80 = vadd.f32 %v69, %v79
    %vm81 = vcmask 204800
    %82 = vst.msk [vmem:[#allocation2] sm:$0x1] %vm81, %v80
    %v83 = vld [vmem:[#allocation3] sm:$0x1]
    %v84 = vsel %vm70, %v63, 0.0
    %v85 = vsel %vm70, %v64, 0.0
    %v86 = vadd.f32 %v84, %v85
    %v87 = vrot.slane %v86, 4
    %v88 = vadd.f32 %v86, %v87
    %v89 = vrot.slane %v88, 2
    %v90 = vadd.f32 %v88, %v89
    %v91 = vrot.slane %v90, 1
    %v92 = vadd.f32 %v90, %v91
    %v93 = vadd.f32 %v83, %v92
    %94 = vst.msk [vmem:[#allocation3] sm:$0x1] %vm81, %v93
    // Predicated region
    $region22: #{discrete_loss.1} parent=1 // pred_check
      %p95 = pneg %p54
    $region23: #{discrete_loss.1} parent=1 // pred_check_branch
      %97 = sbr.rel (%p95) target = $region25
    $region24: #{discrete_loss.1} parent=1 // pred_region
      %v98 = vld [vmem:[#allocation2] sm:$0x1]
      %v100 = vlaneseq
      %v101 = vshrl.u32 %v100, 7
      %v102 = vsub.s32 0, %v101
      %v103 = vrot.slane %v98, %v102
      %105 = vst.msk [vmem:[%s2] sm:$0xff] %vm70, %v103
      %v106 = vld [vmem:[#allocation3] sm:$0x1]
      %v108 = vlaneseq
      %v109 = vshrl.u32 %v108, 7
      %v110 = vsub.s32 0, %v109
      %v111 = vrot.slane %v106, %v110
      %113 = vst.msk [vmem:[#allocation9] sm:$0xff] %vm70, %v111
    $region25: #{discrete_loss.1} parent=1 // pred_fallthru
      _
    // Predicated region
    $region26: #{discrete_loss.1} parent=1 // pred_check
      _
    $region27: #{discrete_loss.1} parent=1 // pred_check_branch
      %115 = sbr.rel (0) target = $region29
    $region28: #{discrete_loss.1} parent=1 // pred_region
      _
    $region29: #{discrete_loss.1} parent=1 // pred_fallthru
      _
    // Predicated region
    $region30: #{discrete_loss.1} parent=1 // pred_check
      _
    $region31: #{discrete_loss.1} parent=1 // pred_check_branch
      %117 = sbr.rel (0) target = $region33
    $region32: #{discrete_loss.1} parent=1 // pred_region
      %s119 = ssub.s32 128, 128
      %120 = vsyncadd [#allocation6], %s119
      %s122 = sshll.u32 [#allocation9], 4
      %s123 = int_to_ptr.vmem [resolvable:$true] %s122
      %125 = dma.vmem_to_hbm [thread:$0]  %s123, 128, %s3, [#allocation6]
    $region33: #{discrete_loss.1} parent=1 // pred_fallthru
      _
    // Predicated region
    $region34: #{discrete_loss.1} parent=1 // pred_check
      _
    $region35: #{discrete_loss.1} parent=1 // pred_check_branch
      %127 = sbr.rel (0) target = $region37
    $region36: #{discrete_loss.1} parent=1 // pred_region
      _
    $region37: #{discrete_loss.1} parent=1 // pred_fallthru
      _
    // Predicated region
    $region38: #{discrete_loss.1} parent=1 // pred_check
      _
    $region39: #{discrete_loss.1} parent=1 // pred_check_branch
      %129 = sbr.rel (0) target = $region41
    $region40: #{discrete_loss.1} parent=1 // pred_region
      %130 = dma.done [#allocation6], 128
    $region41: #{discrete_loss.1} parent=1 // pred_fallthru
      _
    %131 = vsyncpa [#allocation5], 1
    %132 = vsyncpa [#allocation8], 1
    %133 = vsyncpa [#allocation6], 1

</llo_original>
